<compile_context>
chip_gen: v7x
topology: tpu7x:2x2x1
jax: 0.10.0
libtpu: 0.0.40
codegen_flags: <defaults>
</compile_context>

<pallas_src>
import jax
import jax.numpy as jnp
from jax.experimental import pallas as pl
from jax.experimental.pallas import tpu as pltpu

BN_EPS = 1e-5


def neuralnet_kernel(x_ref, w1_ref, w2_ref, vec_ref, o_ref):
    x = x_ref[...]            # (N, Vp) f32, feature axis zero-padded to a multiple of 128
    w1 = w1_ref[...]          # (Vp, Vp) f32, PyTorch (out, in) layout, zero-padded
    w2 = w2_ref[...]          # (Vp, Vp) f32
    vecs = vec_ref[...]       # (8, Vp) f32: rows = [b1, b2, gamma, beta, mask, 0, 0, 0]

    b1 = vecs[0:1, :]
    b2 = vecs[1:2, :]
    gamma = vecs[2:3, :]
    beta = vecs[3:4, :]
    mask = vecs[4:5, :]       # 1.0 on valid feature lanes, 0.0 on padded lanes

    # Contract on the weights' "in" dim (dim 1) directly: h[n,o] = sum_i x[n,i] * w[o,i].
    dn = (((1,), (1,)), ((), ()))

    # ---- linear1 + ReLU (MXU matmul, VPU max) ----
    h = jax.lax.dot_general(x, w1, dimension_numbers=dn,
                            preferred_element_type=jnp.float32) + b1
    h = jnp.maximum(h, 0.0)

    # ---- BatchNorm1d (training mode: biased batch statistics over the batch axis) ----
    n = h.shape[0]
    mean = jnp.sum(h, axis=0, keepdims=True) * (1.0 / n)                   # (1, Vp)
    centered = h - mean
    var = jnp.sum(centered * centered, axis=0, keepdims=True) * (1.0 / n)  # biased var
    scale = jax.lax.rsqrt(var + BN_EPS) * gamma                            # fold gamma
    h = centered * scale + beta

    # ---- linear2 + ReLU ----
    h = jax.lax.dot_general(h, w2, dimension_numbers=dn,
                            preferred_element_type=jnp.float32) + b2
    h = jnp.maximum(h, 0.0)

    # ---- softmax over dim=1 (numerically stable), padded lanes zeroed by the mask ----
    # After ReLU all valid lanes are >= 0 and padded lanes are exactly 0 (zero-padded
    # weights/biases), so including padded lanes in the max is harmless.
    m = jnp.max(h, axis=1, keepdims=True)
    e = jnp.exp(h - m) * mask                 # padded lanes -> exactly 0
    denom = jnp.sum(e, axis=1, keepdims=True)
    o_ref[...] = e / denom                    # exact divide: rows sum to 1 in f32


def prepare_params(w1, b1, w2, b2, gamma, beta):
    """One-time setup: pad static params to lane-dense Vp and pack the row vectors."""
    v = w1.shape[0]
    vp = ((v + 127) // 128) * 128
    pad_cols = ((0, 0), (0, vp - v))
    pad_both = ((0, vp - v), (0, vp - v))

    w1p = jnp.pad(w1.astype(jnp.float32), pad_both)
    w2p = jnp.pad(w2.astype(jnp.float32), pad_both)

    mask = jnp.pad(jnp.ones((1, v), jnp.float32), pad_cols)
    vecs = jnp.concatenate(
        [jnp.pad(b1.astype(jnp.float32), pad_cols),
         jnp.pad(b2.astype(jnp.float32), pad_cols),
         jnp.pad(gamma.astype(jnp.float32), pad_cols),
         jnp.pad(beta.astype(jnp.float32), pad_cols),
         mask,
         jnp.zeros((3, vp), jnp.float32)],
        axis=0)                                        # (8, Vp)
    return w1p, w2p, vecs


@jax.jit
def neuralnet_forward(x, w1p, w2p, vecs):
    """Returns the lane-dense padded (N, Vp) output; consumer slices [:, :V] if needed."""
    n, v = x.shape
    vp = w1p.shape[0]
    xp = jnp.pad(x.astype(jnp.float32), ((0, 0), (0, vp - v)))

    # Whole-array VMEM refs: single fused invocation, no grid (trivially fits VMEM here).
    vmem = pl.BlockSpec(memory_space=pltpu.MemorySpace.VMEM)

    return pl.pallas_call(
        neuralnet_kernel,
        out_shape=jax.ShapeDtypeStruct((n, vp), jnp.float32),
        in_specs=[vmem] * 4,
        out_specs=vmem,
        compiler_params=pltpu.CompilerParams(
            # let XLA fuse the per-call pad of x into the pallas_call input
            allow_input_fusion=[True, False, False, False]),
    )(xp, w1p, w2p, vecs)


def reference_forward(x, w1, b1, w2, b2, gamma, beta):
    h = jnp.maximum(x @ w1.T + b1, 0.0)
    mean = jnp.mean(h, axis=0, keepdims=True)
    var = jnp.mean((h - mean) ** 2, axis=0, keepdims=True)
    h = (h - mean) / jnp.sqrt(var + BN_EPS) * gamma + beta
    h = jnp.maximum(h @ w2.T + b2, 0.0)
    return jax.nn.softmax(h, axis=1)


if __name__ == "__main__":
    batch = 8
    vector_size = 32

    key = jax.random.PRNGKey(0)
    kx, kw1, kb1, kw2, kb2 = jax.random.split(key, 5)

    # Deterministic synthetic parameters (PyTorch-like uniform(-1/sqrt(fan_in), ...)).
    bound = 1.0 / (vector_size ** 0.5)
    x = jax.random.normal(kx, (batch, vector_size), dtype=jnp.float32)
    w1 = jax.random.uniform(kw1, (vector_size, vector_size), jnp.float32, -bound, bound)
    b1 = jax.random.uniform(kb1, (1, vector_size), jnp.float32, -bound, bound)
    w2 = jax.random.uniform(kw2, (vector_size, vector_size), jnp.float32, -bound, bound)
    b2 = jax.random.uniform(kb2, (1, vector_size), jnp.float32, -bound, bound)
    gamma = jnp.ones((1, vector_size), jnp.float32)   # BatchNorm1d affine weight init
    beta = jnp.zeros((1, vector_size), jnp.float32)   # BatchNorm1d affine bias init

    # One-time parameter setup (padding hoisted out of the per-call path).
    w1p, w2p, vecs = prepare_params(w1, b1, w2, b2, gamma, beta)

    out_padded = neuralnet_forward(x, w1p, w2p, vecs)
    out_padded = jax.block_until_ready(out_padded)

    ref = reference_forward(x, w1, b1, w2, b2, gamma, beta)
    out = out_padded[:, :vector_size]                 # consumer-side slice (test only)

    assert out_padded.shape == (batch, 128)
    assert out.shape == (batch, vector_size)
    # exact divide in the softmax epilogue -> tight tolerances
    assert jnp.allclose(jnp.sum(out, axis=1), 1.0, atol=1e-5)
    assert jnp.allclose(out, ref, atol=1e-5, rtol=1e-5)
    # padded lanes are exactly zero (masked softmax numerator)
    assert jnp.all(out_padded[:, vector_size:] == 0.0)

    print("KERNEL_OK")
</pallas_src>

<mosaic_0001>
module attributes {stable_mosaic.version = 11 : i64} {
  func.func @neuralnet_kernel(%arg0: memref<8x128xf32, #tpu.memory_space<vmem>>, %arg1: memref<128x128xf32, #tpu.memory_space<vmem>>, %arg2: memref<128x128xf32, #tpu.memory_space<vmem>>, %arg3: memref<8x128xf32, #tpu.memory_space<vmem>>, %arg4: memref<8x128xf32, #tpu.memory_space<vmem>>) attributes {dimension_semantics = [], scalar_prefetch = 0 : i64, scratch_operands = 0 : i64, tpu.core_type = #tpu.core_type<tc>} {
    %c0 = arith.constant 0 : index
    %c0_0 = arith.constant 0 : index
    %0 = vector.load %arg0[%c0, %c0_0] : memref<8x128xf32, #tpu.memory_space<vmem>>, vector<8x128xf32>
    %c0_1 = arith.constant 0 : index
    %c0_2 = arith.constant 0 : index
    %1 = vector.load %arg1[%c0_1, %c0_2] : memref<128x128xf32, #tpu.memory_space<vmem>>, vector<128x128xf32>
    %c0_3 = arith.constant 0 : index
    %c0_4 = arith.constant 0 : index
    %2 = vector.load %arg2[%c0_3, %c0_4] : memref<128x128xf32, #tpu.memory_space<vmem>>, vector<128x128xf32>
    %c0_5 = arith.constant 0 : index
    %c0_6 = arith.constant 0 : index
    %3 = vector.load %arg3[%c0_5, %c0_6] : memref<8x128xf32, #tpu.memory_space<vmem>>, vector<8x128xf32>
    %4 = vector.extract_strided_slice %3 {offsets = [0, 0], sizes = [1, 128], strides = [1, 1]} : vector<8x128xf32> to vector<1x128xf32>
    %5 = vector.extract_strided_slice %3 {offsets = [1, 0], sizes = [1, 128], strides = [1, 1]} : vector<8x128xf32> to vector<1x128xf32>
    %6 = vector.extract_strided_slice %3 {offsets = [2, 0], sizes = [1, 128], strides = [1, 1]} : vector<8x128xf32> to vector<1x128xf32>
    %7 = vector.extract_strided_slice %3 {offsets = [3, 0], sizes = [1, 128], strides = [1, 1]} : vector<8x128xf32> to vector<1x128xf32>
    %8 = vector.extract_strided_slice %3 {offsets = [4, 0], sizes = [1, 128], strides = [1, 1]} : vector<8x128xf32> to vector<1x128xf32>
    %cst = arith.constant dense<0.000000e+00> : vector<8x128xf32>
    %9 = tpu.matmul %0, %1, %cst {dimension_numbers = #tpu.dot_dimension_numbers<[1], [1], [0], [0], [0, 0, 1, 0], [], []>} : vector<8x128xf32>, vector<128x128xf32>, vector<8x128xf32> -> vector<8x128xf32>
    %10 = vector.broadcast %4 : vector<1x128xf32> to vector<8x128xf32>
    %11 = arith.addf %9, %10 : vector<8x128xf32>
    %cst_7 = arith.constant 0.000000e+00 : f32
    %12 = vector.broadcast %cst_7 : f32 to vector<8x128xf32>
    %13 = arith.maximumf %11, %12 : vector<8x128xf32>
    %cst_8 = arith.constant dense<0.000000e+00> : vector<128xf32>
    %14 = vector.multi_reduction <add>, %13, %cst_8 [0] : vector<8x128xf32> to vector<128xf32>
    %15 = vector.shape_cast %14 : vector<128xf32> to vector<1x128xf32>
    %cst_9 = arith.constant 1.250000e-01 : f32
    %16 = vector.broadcast %cst_9 : f32 to vector<1x128xf32>
    %17 = arith.mulf %15, %16 : vector<1x128xf32>
    %18 = vector.broadcast %17 : vector<1x128xf32> to vector<8x128xf32>
    %19 = arith.subf %13, %18 : vector<8x128xf32>
    %20 = arith.mulf %19, %19 : vector<8x128xf32>
    %cst_10 = arith.constant dense<0.000000e+00> : vector<128xf32>
    %21 = vector.multi_reduction <add>, %20, %cst_10 [0] : vector<8x128xf32> to vector<128xf32>
    %22 = vector.shape_cast %21 : vector<128xf32> to vector<1x128xf32>
    %cst_11 = arith.constant 1.250000e-01 : f32
    %23 = vector.broadcast %cst_11 : f32 to vector<1x128xf32>
    %24 = arith.mulf %22, %23 : vector<1x128xf32>
    %cst_12 = arith.constant 9.99999974E-6 : f32
    %25 = vector.broadcast %cst_12 : f32 to vector<1x128xf32>
    %26 = arith.addf %24, %25 : vector<1x128xf32>
    %27 = math.rsqrt %26 : vector<1x128xf32>
    %28 = arith.mulf %27, %6 : vector<1x128xf32>
    %29 = vector.broadcast %28 : vector<1x128xf32> to vector<8x128xf32>
    %30 = arith.mulf %19, %29 : vector<8x128xf32>
    %31 = vector.broadcast %7 : vector<1x128xf32> to vector<8x128xf32>
    %32 = arith.addf %30, %31 : vector<8x128xf32>
    %cst_13 = arith.constant dense<0.000000e+00> : vector<8x128xf32>
    %33 = tpu.matmul %32, %2, %cst_13 {dimension_numbers = #tpu.dot_dimension_numbers<[1], [1], [0], [0], [0, 0, 1, 0], [], []>} : vector<8x128xf32>, vector<128x128xf32>, vector<8x128xf32> -> vector<8x128xf32>
    %34 = vector.broadcast %5 : vector<1x128xf32> to vector<8x128xf32>
    %35 = arith.addf %33, %34 : vector<8x128xf32>
    %cst_14 = arith.constant 0.000000e+00 : f32
    %36 = vector.broadcast %cst_14 : f32 to vector<8x128xf32>
    %37 = arith.maximumf %35, %36 : vector<8x128xf32>
    %cst_15 = arith.constant dense<0xFF800000> : vector<8xf32>
    %38 = vector.multi_reduction <maximumf>, %37, %cst_15 [1] : vector<8x128xf32> to vector<8xf32>
    %39 = vector.shape_cast %38 : vector<8xf32> to vector<8x1xf32>
    %40 = vector.broadcast %39 : vector<8x1xf32> to vector<8x128xf32>
    %41 = arith.subf %37, %40 : vector<8x128xf32>
    %42 = math.exp %41 : vector<8x128xf32>
    %43 = vector.broadcast %8 : vector<1x128xf32> to vector<8x128xf32>
    %44 = arith.mulf %42, %43 : vector<8x128xf32>
    %cst_16 = arith.constant dense<0.000000e+00> : vector<8xf32>
    %45 = vector.multi_reduction <add>, %44, %cst_16 [1] : vector<8x128xf32> to vector<8xf32>
    %46 = vector.shape_cast %45 : vector<8xf32> to vector<8x1xf32>
    %47 = vector.broadcast %46 : vector<8x1xf32> to vector<8x128xf32>
    %48 = arith.divf %44, %47 : vector<8x128xf32>
    %c0_17 = arith.constant 0 : index
    %c0_18 = arith.constant 0 : index
    %49 = vector.load %arg4[%c0_17, %c0_18] : memref<8x128xf32, #tpu.memory_space<vmem>>, vector<8x128xf32>
    tpu.vector_store %arg4[%c0_17, %c0_18], %48 {strides = array<i32>} : memref<8x128xf32, #tpu.memory_space<vmem>>, vector<8x128xf32>,
    return
  }
}

</mosaic_0001>

<llo_original>
// kernel: neuralnet_forward.2
$region0: #{neuralnet_forward.2}
  #allocation0 [shape = 'u32[]', space=smem, size = 0x4, offset = 0x4, fixed_abs, tag = 'smem constant byte address 0x4 - core index']
  #allocation1 [shape = 'u32[144,128]{1,0:T(1,128)}', space=vmem, size = 0x12000, scoped, tag = 'internal scratch']
  #allocation2 [shape = 'u32[2048]{0}', space=vmem, size = 0x2000, scoped, tag = 'scoped memory for neuralnet_forward.2']
  #allocation3 [shape = 'u32[2048]{0}', space=vmem, size = 0x2000, scoped, tag = 'scoped memory for neuralnet_forward.2']
  #allocation4 [shape = 'u32[2048]{0}', space=vmem, size = 0x2000, scoped, tag = 'scoped memory for neuralnet_forward.2']
  #allocation5 [shape = 'u32[2048]{0}', space=vmem, size = 0x2000, scoped, tag = 'scoped memory for neuralnet_forward.2']
  #allocation6 [shape = 'u32[2048]{0}', space=vmem, size = 0x2000, scoped, tag = 'scoped memory for neuralnet_forward.2']
  %s0 = inlined_call_operand.hbm [shape: f32[128,128], index: 0, kind: input, shape index: {}]
  %s1 = inlined_call_operand.hbm [shape: f32[128,128], index: 1, kind: input, shape index: {}]
  %s2 = inlined_call_operand.vmem [shape: f32[8,128], index: 2, kind: input, shape index: {}]
  %s3 = inlined_call_operand.hbm [shape: f32[8,32], index: 3, kind: input, shape index: {}]
  %s4 = inlined_call_operand.<no memory space> [shape: f32[], index: 4, kind: input, shape index: {}]
  %s5 = inlined_call_operand.hbm [shape: f32[8,128], index: 5, kind: output, shape index: {}]
  %s6 = sld [smem:[#allocation0]]
  $region38: #{neuralnet_forward.2} parent=0
    _
  %s8 = ssub.s32 1, %s6
  %s9 = scalar_select 0, %s8, %s6
  %v10 = vstv %s4
  $region1: #{neuralnet_forward.2} parent=0
    #allocation7 [shape = 'u8[4096]{0}', space=vmem, size = 0x1000, scoped, tag = 'operand span for operand 3']
    #allocation8 [shape = 's32[1]{0}', space=sflag, size = 0x4, scoped, tag = 'scoped memory for neuralnet_forward.2']
    #allocation9 [shape = 's32[1]{0}', space=sflag, size = 0x4, scoped, tag = 'scoped memory for neuralnet_forward.2']
    #allocation10 [shape = 'u8[65536]{0}', space=vmem, size = 0x10000, scoped, tag = 'input window, operand 1, single buffered']
    #allocation11 [shape = 's32[1]{0}', space=sflag, size = 0x4, scoped, tag = 'scoped memory for neuralnet_forward.2']
    #allocation12 [shape = 'u8[65536]{0}', space=vmem, size = 0x10000, scoped, tag = 'input window, operand 2, single buffered']
    #allocation13 [shape = 'u8[4096]{0}', space=vmem, size = 0x1000, scoped, tag = 'output window, operand 0, single buffered']
    #allocation14 [shape = 'u8[4096]{0}', space=vmem, size = 0x1000, dematerialized = true, scoped, tag = 'FusionAdapter Buffer %fusion.1 = f32[8,128]{1,0:T(8,128)} fusion(%param_3.1, %param_4), kind=kLoop, calls=%fused_computation.1.clone, metadata={op_name="jit(neuralnet_forward)/jit(_pad)/pad" stack_frame_id=1}']
    %11 = vsyncpa [#allocation8], 0
    %12 = vsyncpa [#allocation11], 0
    %13 = vsyncpa [#allocation9], 0
    // Predicated region
    $region2: #{neuralnet_forward.2} parent=1 // pred_check
      _
    $region3: #{neuralnet_forward.2} parent=1 // pred_check_branch
      %15 = sbr.rel (0) target = $region5
    $region4: #{neuralnet_forward.2} parent=1 // pred_region
      %s17 = ssub.s32 128, 128
      %18 = vsyncadd [#allocation8], %s17
      %s20 = sshll.u32 [#allocation7], 4
      %s21 = int_to_ptr.vmem [resolvable:$true] %s20
      %23 = dma.hbm_to_vmem [thread:$0]  %s3, 128, %s21, [#allocation8]
    $region5: #{neuralnet_forward.2} parent=1 // pred_fallthru
      _
    // Predicated region
    $region6: #{neuralnet_forward.2} parent=1 // pred_check
      _
    $region7: #{neuralnet_forward.2} parent=1 // pred_check_branch
      %25 = sbr.rel (0) target = $region9
    $region8: #{neuralnet_forward.2} parent=1 // pred_region
      %s27 = ssub.s32 2048, 2048
      %28 = vsyncadd [#allocation11], %s27
      %s29 = sshll.u32 [#allocation10], 4
      %s30 = int_to_ptr.vmem [resolvable:$true] %s29
      %35 = dma.hbm_to_vmem [thread:$0]  %s0, 2048, %s30, [#allocation11], 128, 128, 8
    $region9: #{neuralnet_forward.2} parent=1 // pred_fallthru
      _
    // Predicated region
    $region10: #{neuralnet_forward.2} parent=1 // pred_check
      _
    $region11: #{neuralnet_forward.2} parent=1 // pred_check_branch
      %37 = sbr.rel (0) target = $region13
    $region12: #{neuralnet_forward.2} parent=1 // pred_region
      %s39 = ssub.s32 2048, 2048
      %40 = vsyncadd [#allocation11], %s39
      %s41 = sshll.u32 [#allocation12], 4
      %s42 = int_to_ptr.vmem [resolvable:$true] %s41
      %47 = dma.hbm_to_vmem [thread:$0]  %s1, 2048, %s42, [#allocation11], 128, 128, 8
    $region13: #{neuralnet_forward.2} parent=1 // pred_fallthru
      _
    // Predicated region
    $region14: #{neuralnet_forward.2} parent=1 // pred_check
      _
    $region15: #{neuralnet_forward.2} parent=1 // pred_check_branch
      %49 = sbr.rel (0) target = $region17
    $region16: #{neuralnet_forward.2} parent=1 // pred_region
      _
    $region17: #{neuralnet_forward.2} parent=1 // pred_fallthru
      _
    // Predicated region
    $region18: #{neuralnet_forward.2} parent=1 // pred_check
      _
    $region19: #{neuralnet_forward.2} parent=1 // pred_check_branch
      %51 = sbr.rel (0) target = $region21
    $region20: #{neuralnet_forward.2} parent=1 // pred_region
      %52 = dma.done [#allocation8], 128
    $region21: #{neuralnet_forward.2} parent=1 // pred_fallthru
      _
    // Predicated region
    $region22: #{neuralnet_forward.2} parent=1 // pred_check
      _
    $region23: #{neuralnet_forward.2} parent=1 // pred_check_branch
      %54 = sbr.rel (0) target = $region25
    $region24: #{neuralnet_forward.2} parent=1 // pred_region
      %55 = dma.done [#allocation11], 2048
    $region25: #{neuralnet_forward.2} parent=1 // pred_fallthru
      _
    // Predicated region
    $region26: #{neuralnet_forward.2} parent=1 // pred_check
      _
    $region27: #{neuralnet_forward.2} parent=1 // pred_check_branch
      %57 = sbr.rel (0) target = $region29
    $region28: #{neuralnet_forward.2} parent=1 // pred_region
      %58 = dma.done [#allocation11], 2048
    $region29: #{neuralnet_forward.2} parent=1 // pred_fallthru
      _
    %v59 = vld [vmem:[#allocation7] sm:$0xff]
    %v60 = vlaneseq
    %v61 = vand.u32 %v60, 127
    %vm63 = vcmp.lt.s32.totalorder %v61, 32
    %v64 = vsel %vm63, %v59, %v10
    %66 = vst [vmem:[#allocation14] sm:$0xff] %v64
    %v67 = vld [vmem:[#allocation14] sm:$0xff]
    %v68 = vld [vmem:[#allocation10] sm:$0xff]
    %v69 = vld [vmem:[#allocation10 + $0x8] sm:$0xff]
    %v70 = vld [vmem:[#allocation10 + $0x10] sm:$0xff]
    %v71 = vld [vmem:[#allocation10 + $0x18] sm:$0xff]
    %v72 = vld [vmem:[#allocation10 + $0x20] sm:$0xff]
    %v73 = vld [vmem:[#allocation10 + $0x28] sm:$0xff]
    %v74 = vld [vmem:[#allocation10 + $0x30] sm:$0xff]
    %v75 = vld [vmem:[#allocation10 + $0x38] sm:$0xff]
    %v76 = vld [vmem:[#allocation10 + $0x40] sm:$0xff]
    %v77 = vld [vmem:[#allocation10 + $0x48] sm:$0xff]
    %v78 = vld [vmem:[#allocation10 + $0x50] sm:$0xff]
    %v79 = vld [vmem:[#allocation10 + $0x58] sm:$0xff]
    %v80 = vld [vmem:[#allocation10 + $0x60] sm:$0xff]
    %v81 = vld [vmem:[#allocation10 + $0x68] sm:$0xff]
    %v82 = vld [vmem:[#allocation10 + $0x70] sm:$0xff]
    %v83 = vld [vmem:[#allocation10 + $0x78] sm:$0xff]
    %v84 = vld [vmem:[#allocation12] sm:$0xff]
    %v85 = vld [vmem:[#allocation12 + $0x8] sm:$0xff]
    %v86 = vld [vmem:[#allocation12 + $0x10] sm:$0xff]
    %v87 = vld [vmem:[#allocation12 + $0x18] sm:$0xff]
    %v88 = vld [vmem:[#allocation12 + $0x20] sm:$0xff]
    %v89 = vld [vmem:[#allocation12 + $0x28] sm:$0xff]
    %v90 = vld [vmem:[#allocation12 + $0x30] sm:$0xff]
    %v91 = vld [vmem:[#allocation12 + $0x38] sm:$0xff]
    %v92 = vld [vmem:[#allocation12 + $0x40] sm:$0xff]
    %v93 = vld [vmem:[#allocation12 + $0x48] sm:$0xff]
    %v94 = vld [vmem:[#allocation12 + $0x50] sm:$0xff]
    %v95 = vld [vmem:[#allocation12 + $0x58] sm:$0xff]
    %v96 = vld [vmem:[#allocation12 + $0x60] sm:$0xff]
    %v97 = vld [vmem:[#allocation12 + $0x68] sm:$0xff]
    %v98 = vld [vmem:[#allocation12 + $0x70] sm:$0xff]
    %v99 = vld [vmem:[#allocation12 + $0x78] sm:$0xff]
    %v100 = vld [vmem:[%s2] sm:$0xff]
    %v101 = vlaneseq
    %v102 = vshrl.u32 %v101, 7
    %v103 = vsub.s32 0, %v102
    %v104 = vrot.slane %v100, %v103
    %105 = vmatprep.subr.mxu0 0.0
    %106 = vmatpush1.xpose.msra.mxu0 %v68
    %107 = vmatprep.subr.mxu0 0.0
    %108 = vmatpush1.xpose.msra.mxu0 %v69
    %109 = vmatprep.subr.mxu0 0.0
    %110 = vmatpush1.xpose.msra.mxu0 %v70
    %111 = vmatprep.subr.mxu0 0.0
    %112 = vmatpush1.xpose.msra.mxu0 %v71
    %113 = vmatprep.subr.mxu0 0.0
    %114 = vmatpush1.xpose.msra.mxu0 %v72
    %115 = vmatprep.subr.mxu0 0.0
    %116 = vmatpush1.xpose.msra.mxu0 %v73
    %117 = vmatprep.subr.mxu0 0.0
    %118 = vmatpush1.xpose.msra.mxu0 %v74
    %119 = vmatprep.subr.mxu0 0.0
    %120 = vmatpush1.xpose.msra.mxu0 %v75
    %121 = vmatprep.subr.mxu0 0.0
    %122 = vmatpush1.xpose.msra.mxu0 %v76
    %123 = vmatprep.subr.mxu0 0.0
    %124 = vmatpush1.xpose.msra.mxu0 %v77
    %125 = vmatprep.subr.mxu0 0.0
    %126 = vmatpush1.xpose.msra.mxu0 %v78
    %127 = vmatprep.subr.mxu0 0.0
    %128 = vmatpush1.xpose.msra.mxu0 %v79
    %129 = vmatprep.subr.mxu0 0.0
    %130 = vmatpush1.xpose.msra.mxu0 %v80
    %131 = vmatprep.subr.mxu0 0.0
    %132 = vmatpush1.xpose.msra.mxu0 %v81
    %133 = vmatprep.subr.mxu0 0.0
    %134 = vmatpush1.xpose.msra.mxu0 %v82
    %135 = vmatprep.subr.mxu0 0.0
    %136 = vmatpush1.xpose.msra.mxu0 %v83
    %137 = vmatprep.subr.mxu0 0.0
    %138 = vmatpush1.xpose.msra.mxu0 0.0
    %139 = vmatprep.subr.mxu0 0.0
    %140 = vmatpush1.xpose.msra.mxu0 0.0
    %141 = vmatprep.subr.mxu0 0.0
    %142 = vmatpush1.xpose.msra.mxu0 0.0
    %143 = vmatprep.subr.mxu0 0.0
    %144 = vmatpush1.xpose.msra.mxu0 0.0
    %145 = vmatprep.subr.mxu0 0.0
    %146 = vmatpush1.xpose.msra.mxu0 0.0
    %147 = vmatprep.subr.mxu0 0.0
    %148 = vmatpush1.xpose.msra.mxu0 0.0
    %149 = vmatprep.subr.mxu0 0.0
    %150 = vmatpush1.xpose.msra.mxu0 0.0
    %151 = vmatprep.subr.mxu0 0.0
    %152 = vmatpush1.xpose.msra.mxu0 0.0
    %153 = vmatprep.subr.mxu0 0.0
    %154 = vmatpush1.xpose.msra.mxu0 0.0
    %155 = vmatprep.subr.mxu0 0.0
    %156 = vmatpush1.xpose.msra.mxu0 0.0
    %157 = vmatprep.subr.mxu0 0.0
    %158 = vmatpush1.xpose.msra.mxu0 0.0
    %159 = vmatprep.subr.mxu0 0.0
    %160 = vmatpush1.xpose.msra.mxu0 0.0
    %161 = vmatprep.subr.mxu0 0.0
    %162 = vmatpush1.xpose.msra.mxu0 0.0
    %163 = vmatprep.subr.mxu0 0.0
    %164 = vmatpush1.xpose.msra.mxu0 0.0
    %165 = vmatprep.subr.mxu0 0.0
    %166 = vmatpush1.xpose.msra.mxu0 0.0
    %167 = vmatprep.subr.mxu0 0.0
    %168 = vmatpush1.xpose.msra.mxu0 0.0
    %169 = vmatprep.mubr.f32.mxu0 0.0
    %170 = vmatmul.mubr.f32.gmra.mrb[0].mxu0 %v67
    %v171 = vpop.f32.mrb[0].mxu0
    %v172 = vadd.f32 %v104, %v171
    %v173 = vpop.f32.mrb[0].mxu0
    %174 = vdwg.mxu0
    %v175 = vmax.f32 %v172, 0.0
    %v176 = vrot.slane %v175, 4
    %v177 = vadd.f32 %v175, %v176
    %v178 = vrot.slane %v177, 2
    %v179 = vadd.f32 %v177, %v178
    %v180 = vrot.slane %v179, 1
    %v181 = vadd.f32 %v179, %v180
    %v182 = vmul.f32 %v181, 0.125
    %v183 = vsub.f32 %v175, %v182
    %v184 = vmul.f32 %v183, %v183
    %v185 = vrot.slane %v184, 4
    %v186 = vadd.f32 %v184, %v185
    %v187 = vrot.slane %v186, 2
    %v188 = vadd.f32 %v186, %v187
    %v189 = vrot.slane %v188, 1
    %v190 = vadd.f32 %v188, %v189
    %v191 = vmul.f32 %v190, 0.125
    %v192 = vadd.f32 %v191, 1e-05
    %v193 = vrsqrt.pop %v192
    %v194 = vmul.f32 %v193, %v100
    %v195 = vlaneseq
    %v196 = vshrl.u32 %v195, 7
    %v197 = vsub.s32 2, %v196
    %v198 = vrot.slane %v194, %v197
    %v199 = vmul.f32 %v183, %v198
    %v200 = vlaneseq
    %v201 = vshrl.u32 %v200, 7
    %v202 = vsub.s32 3, %v201
    %v203 = vrot.slane %v100, %v202
    %v204 = vadd.f32 %v199, %v203
    %v205 = vlaneseq
    %v206 = vshrl.u32 %v205, 7
    %v207 = vsub.s32 1, %v206
    %v208 = vrot.slane %v100, %v207
    %209 = vmatprep.subr.mxu0 0.0
    %210 = vmatpush1.xpose.msra.mxu0 %v84
    %211 = vmatprep.subr.mxu0 0.0
    %212 = vmatpush1.xpose.msra.mxu0 %v85
    %213 = vmatprep.subr.mxu0 0.0
    %214 = vmatpush1.xpose.msra.mxu0 %v86
    %215 = vmatprep.subr.mxu0 0.0
    %216 = vmatpush1.xpose.msra.mxu0 %v87
    %217 = vmatprep.subr.mxu0 0.0
    %218 = vmatpush1.xpose.msra.mxu0 %v88
    %219 = vmatprep.subr.mxu0 0.0
    %220 = vmatpush1.xpose.msra.mxu0 %v89
    %221 = vmatprep.subr.mxu0 0.0
    %222 = vmatpush1.xpose.msra.mxu0 %v90
    %223 = vmatprep.subr.mxu0 0.0
    %224 = vmatpush1.xpose.msra.mxu0 %v91
    %225 = vmatprep.subr.mxu0 0.0
    %226 = vmatpush1.xpose.msra.mxu0 %v92
    %227 = vmatprep.subr.mxu0 0.0
    %228 = vmatpush1.xpose.msra.mxu0 %v93
    %229 = vmatprep.subr.mxu0 0.0
    %230 = vmatpush1.xpose.msra.mxu0 %v94
    %231 = vmatprep.subr.mxu0 0.0
    %232 = vmatpush1.xpose.msra.mxu0 %v95
    %233 = vmatprep.subr.mxu0 0.0
    %234 = vmatpush1.xpose.msra.mxu0 %v96
    %235 = vmatprep.subr.mxu0 0.0
    %236 = vmatpush1.xpose.msra.mxu0 %v97
    %237 = vmatprep.subr.mxu0 0.0
    %238 = vmatpush1.xpose.msra.mxu0 %v98
    %239 = vmatprep.subr.mxu0 0.0
    %240 = vmatpush1.xpose.msra.mxu0 %v99
    %241 = vmatprep.subr.mxu0 0.0
    %242 = vmatpush1.xpose.msra.mxu0 0.0
    %243 = vmatprep.subr.mxu0 0.0
    %244 = vmatpush1.xpose.msra.mxu0 0.0
    %245 = vmatprep.subr.mxu0 0.0
    %246 = vmatpush1.xpose.msra.mxu0 0.0
    %247 = vmatprep.subr.mxu0 0.0
    %248 = vmatpush1.xpose.msra.mxu0 0.0
    %249 = vmatprep.subr.mxu0 0.0
    %250 = vmatpush1.xpose.msra.mxu0 0.0
    %251 = vmatprep.subr.mxu0 0.0
    %252 = vmatpush1.xpose.msra.mxu0 0.0
    %253 = vmatprep.subr.mxu0 0.0
    %254 = vmatpush1.xpose.msra.mxu0 0.0
    %255 = vmatprep.subr.mxu0 0.0
    %256 = vmatpush1.xpose.msra.mxu0 0.0
    %257 = vmatprep.subr.mxu0 0.0
    %258 = vmatpush1.xpose.msra.mxu0 0.0
    %259 = vmatprep.subr.mxu0 0.0
    %260 = vmatpush1.xpose.msra.mxu0 0.0
    %261 = vmatprep.subr.mxu0 0.0
    %262 = vmatpush1.xpose.msra.mxu0 0.0
    %263 = vmatprep.subr.mxu0 0.0
    %264 = vmatpush1.xpose.msra.mxu0 0.0
    %265 = vmatprep.subr.mxu0 0.0
    %266 = vmatpush1.xpose.msra.mxu0 0.0
    %267 = vmatprep.subr.mxu0 0.0
    %268 = vmatpush1.xpose.msra.mxu0 0.0
    %269 = vmatprep.subr.mxu0 0.0
    %270 = vmatpush1.xpose.msra.mxu0 0.0
    %271 = vmatprep.subr.mxu0 0.0
    %272 = vmatpush1.xpose.msra.mxu0 0.0
    %273 = vmatprep.mubr.f32.mxu0 0.0
    %274 = vmatmul.mubr.f32.gmra.mrb[0].mxu0 %v204
    %v275 = vpop.f32.mrb[0].mxu0
    %v276 = vadd.f32 %v208, %v275
    %v277 = vpop.f32.mrb[0].mxu0
    %278 = vdwg.mxu0
    %v279 = vmax.f32 %v276, 0.0
    %280 = vmax.xlane.f32.xlu0 %v279
    %v281 = vpop.xlane.xlu0 %280
    %v282 = vsub.f32 %v279, %v281
    %v283 = vmul.f32 %v282, 1.442695
    %v284 = vpow.pop %v283
    %v285 = vlaneseq
    %v286 = vshrl.u32 %v285, 7
    %v287 = vsub.s32 4, %v286
    %v288 = vrot.slane %v100, %v287
    %v289 = vmul.f32 %v284, %v288
    %290 = vadd.xlane.f32.xlu0 %v289
    %v291 = vpop.xlane.xlu0 %290
    %v292 = vrcp.pop %v291
    %v293 = vmul.f32 %v289, %v292
    %294 = vst [vmem:[#allocation13] sm:$0xff] %v293
    // Predicated region
    $region30: #{neuralnet_forward.2} parent=1 // pred_check
      _
    $region31: #{neuralnet_forward.2} parent=1 // pred_check_branch
      %296 = sbr.rel (0) target = $region33
    $region32: #{neuralnet_forward.2} parent=1 // pred_region
      %s298 = ssub.s32 128, 128
      %299 = vsyncadd [#allocation9], %s298
      %s301 = sshll.u32 [#allocation13], 4
      %s302 = int_to_ptr.vmem [resolvable:$true] %s301
      %304 = dma.vmem_to_hbm [thread:$0]  %s302, 128, %s5, [#allocation9]
    $region33: #{neuralnet_forward.2} parent=1 // pred_fallthru
      _
    // Predicated region
    $region34: #{neuralnet_forward.2} parent=1 // pred_check
      _
    $region35: #{neuralnet_forward.2} parent=1 // pred_check_branch
      %306 = sbr.rel (0) target = $region37
    $region36: #{neuralnet_forward.2} parent=1 // pred_region
      %307 = dma.done [#allocation9], 128
    $region37: #{neuralnet_forward.2} parent=1 // pred_fallthru
      _
    %308 = vsyncpa [#allocation8], 1
    %309 = vsyncpa [#allocation11], 1
    %310 = vsyncpa [#allocation9], 1

</llo_original>
